<compile_context>
chip_gen: v6e
topology: v6e:2x2x1
jax: 0.10.0
libtpu: 0.0.40
codegen_flags: <defaults>
</compile_context>

<pallas_src>
import math
import numpy as np
import jax
import jax.numpy as jnp
from jax.experimental import pallas as pl
from jax.experimental.pallas import tpu as pltpu


def _pair(v):
    return (v, v) if isinstance(v, int) else tuple(v)


def _round_up(v, m):
    return ((v + m - 1) // m) * m


def _build_pool_matrix(H, W, kernel_size, stride, padding, count_include_pad,
                       ceil_mode, multiplier):
    """Dense pooling matrix P of shape (H*W, Lo_pad) such that
         (t.reshape(H*W) @ P)[ho*Wo + wo] == multiplier * avg_pool2d(t)[ho, wo]
    The avg-pool divisor (separable) and the kernel-size multiplier are folded
    in; the output columns are zero-padded up to a multiple of 128 so the
    kernel's output store is lane-dense (unmasked vst).

    Note: the dense Kronecker matrix scales as O(H*W * Ho*Wo); fine for the
    small feature maps / pools this module targets.
    """
    kh, kw = _pair(kernel_size)
    sh, sw = _pair(stride)
    ph, pw = _pair(padding)
    # TODO(synk): ceil_mode=True output-size rounding not implemented.
    assert not ceil_mode, "ceil_mode=True not supported"
    Ho = (H + 2 * ph - kh) // sh + 1
    Wo = (W + 2 * pw - kw) // sw + 1
    Ph = np.zeros((Ho, H), np.float32)
    Pw = np.zeros((Wo, W), np.float32)
    for o in range(Ho):
        st = o * sh - ph
        for i in range(kh):
            h = st + i
            if 0 <= h < H:
                Ph[o, h] = 1.0
    for o in range(Wo):
        st = o * sw - pw
        for i in range(kw):
            w = st + i
            if 0 <= w < W:
                Pw[o, w] = 1.0
    # AvgPool divisor is separable:
    #   count_include_pad=True  -> kh * kw
    #   count_include_pad=False -> (#valid rows in window) * (#valid cols)
    if count_include_pad:
        rh = np.full((Ho,), float(kh), np.float32)
        rw = np.full((Wo,), float(kw), np.float32)
    else:
        rh = np.maximum(Ph.sum(axis=1), 1.0)
        rw = np.maximum(Pw.sum(axis=1), 1.0)
    Ph_s = Ph * (multiplier / rh)[:, None]
    Pw_s = Pw * (1.0 / rw)[:, None]
    # Kronecker combination: P_kron[ho*Wo + wo, h*W + w] = Ph_s[ho,h] * Pw_s[wo,w]
    P_kron = np.kron(Ph_s, Pw_s)                           # (Ho*Wo, H*W)
    Lo = Ho * Wo
    Lo_pad = max(128, _round_up(Lo, 128))
    P = np.zeros((H * W, Lo_pad), np.float32)
    P[:, :Lo] = P_kron.T
    return P, Ho, Wo, Lo, Lo_pad


def _make_hist_kernel(Rb, HW, num_bins, normalize_bins):
    RbG = Rb // num_bins

    def kernel(p_ref, x_ref, pool_ref, o_ref):
        x = x_ref[...].astype(jnp.float32)        # (Rb, HW)  lane-dense rows
        p = p_ref[...]                            # (Rb, 2)   per-row params
        b = p[:, 0:1]                             # bin-center bias  (Rb, 1)
        w = p[:, 1:2]                             # bin-width weight (Rb, 1)
        # depthwise 1x1 (weight==1) -> abs -> depthwise 1x1 (bias==1) -> relu
        t = jnp.maximum(w * jnp.abs(x + b) + 1.0, 0.0)

        if normalize_bins:
            if num_bins == 1:
                t = t * pl.reciprocal(t + 1e-5, approx=False)
            else:
                # Bins are num_bins consecutive rows of the same group.
                tg = t.reshape(RbG, num_bins, HW)
                s = tg[:, 0, :]
                for bi in range(1, num_bins):     # static unroll; num_bins small
                    s = s + tg[:, bi, :]
                inv = pl.reciprocal(s + 1e-5, approx=False)   # one per group
                t = (tg * inv[:, None, :]).reshape(Rb, HW)

        # Entire average pooling (divisor + multiplier pre-folded) as a single
        # MXU contraction with K = H*W and a lane-dense (multiple of 128) N.
        o_ref[...] = jnp.dot(t, pool_ref[...],
                             preferred_element_type=jnp.float32).astype(o_ref.dtype)

    return kernel


def _vmem_limits():
    cap = 64 << 20            # conservative fallback = smallest generation (v7x)
    try:
        cap = int(getattr(pltpu.get_tpu_info(), "vmem_capacity_bytes", cap))
    except Exception:
        pass
    limit = max(32 << 20, min(cap * 3 // 4, 96 << 20))
    return cap, limit


def _choose_rows_per_block(R, num_bins, bytes_per_row, budget_bytes, min_steps=4):
    """Rows per grid step: a divisor of R that keeps bin groups intact and the
    sublane tiling happy, fits the VMEM budget, and (when possible) leaves at
    least `min_steps` grid steps for pipelining / dual-TC sharding."""
    q = (num_bins * 8) // math.gcd(num_bins, 8)      # group + sublane alignment
    cands = [d for d in range(1, R + 1) if R % d == 0 and (d % q == 0 or d == R)]
    fit = [d for d in cands if d * bytes_per_row <= budget_bytes] or [min(cands)]
    for steps in (min_steps, 2, 1):
        ok = [d for d in fit if R // d >= steps]
        if ok:
            return max(ok)
    return max(fit)


def hist_module_forward(x, bin_centers_bias, bin_widths_weight, *,
                        num_bins=1, kernel_size=2, stride=1, padding=0,
                        normalize_count=False, normalize_bins=True,
                        count_include_pad=False, ceil_mode=False):
    N, C, H, W = x.shape
    assert C % num_bins == 0
    R, HW = N * C, H * W

    # torch quirk: multiplier = np.prod(np.asarray(kernel_size)) of the value
    # *as given* (an int kernel_size gives kh, not kh*kw).
    multiplier = 1.0 if normalize_count else float(np.prod(np.asarray(kernel_size)))
    pool_np, Ho, Wo, Lo, Lo_pad = _build_pool_matrix(
        H, W, kernel_size, stride, padding, count_include_pad, ceil_mode, multiplier)
    pool = jnp.asarray(pool_np)                       # (HW, Lo_pad), f32

    # Per-row (n, c) affine parameters packed as two lane-broadcastable columns.
    b_rows = jnp.tile(jnp.asarray(bin_centers_bias, jnp.float32).reshape(C), (N,))
    w_rows = jnp.tile(jnp.asarray(bin_widths_weight, jnp.float32).reshape(C), (N,))
    params = jnp.stack([b_rows, w_rows], axis=-1)     # (R, 2)

    x2 = x.reshape(R, HW)                             # lane-dense input view

    # Padding-aware per-row VMEM footprint: double-buffered input + output
    # blocks, params, and ~4x HW for in-kernel temporaries / relayout slack.
    HW_pad = _round_up(HW, 128)
    bytes_per_row = 4 * (2 * HW_pad + 2 * Lo_pad + 4 * HW_pad + 2 * 128)
    pool_bytes = 2 * _round_up(HW, 8) * Lo_pad * 4
    _cap, vmem_limit = _vmem_limits()
    budget = max(vmem_limit // 2 - pool_bytes, 1 << 20)
    Rb = _choose_rows_per_block(R, num_bins, bytes_per_row, budget)
    grid = (R // Rb,)

    kernel = _make_hist_kernel(Rb, HW, num_bins, normalize_bins)
    out2 = pl.pallas_call(
        kernel,
        out_shape=jax.ShapeDtypeStruct((R, Lo_pad), x.dtype),
        grid_spec=pltpu.PrefetchScalarGridSpec(
            num_scalar_prefetch=0,
            grid=grid,
            in_specs=[
                pl.BlockSpec((Rb, 2), lambda i: (i, 0)),        # per-row bias/width
                pl.BlockSpec((Rb, HW), lambda i: (i, 0)),       # x rows (lane-dense)
                pl.BlockSpec((HW, Lo_pad), lambda i: (0, 0)),   # fused pooling matrix
            ],
            out_specs=pl.BlockSpec((Rb, Lo_pad), lambda i: (i, 0)),
        ),
        compiler_params=pltpu.CompilerParams(
            dimension_semantics=("parallel",),
            vmem_limit_bytes=int(vmem_limit)),
    )(params, x2, pool)

    # Drop the lane-padding columns and restore (N, C, Ho, Wo).
    return out2[:, :Lo].reshape(N, C, Ho, Wo)


def _reference_numpy(x, bc, ww, *, num_bins, kernel_size, stride, padding,
                     normalize_count=False, normalize_bins=True,
                     count_include_pad=False, ceil_mode=False):
    assert not ceil_mode
    x = np.asarray(x, np.float32)
    bc = np.asarray(bc, np.float32).reshape(1, -1, 1, 1)
    ww = np.asarray(ww, np.float32).reshape(1, -1, 1, 1)
    N, C, H, W = x.shape
    t = np.maximum(ww * np.abs(x + bc) + 1.0, 0.0)
    if normalize_bins:
        g = C // num_bins
        s = t.reshape(N, g, num_bins, H, W).sum(2) + 1e-5
        t = t / np.repeat(s, num_bins, axis=1)
    kh, kw = _pair(kernel_size)
    sh, sw = _pair(stride)
    ph_, pw_ = _pair(padding)
    Ho = (H + 2 * ph_ - kh) // sh + 1
    Wo = (W + 2 * pw_ - kw) // sw + 1
    xp = np.zeros((N, C, H + 2 * ph_, W + 2 * pw_), np.float32)
    xp[:, :, ph_:ph_ + H, pw_:pw_ + W] = t
    out = np.zeros((N, C, Ho, Wo), np.float32)
    for ho in range(Ho):
        for wo in range(Wo):
            win = xp[:, :, ho * sh:ho * sh + kh, wo * sw:wo * sw + kw]
            if count_include_pad:
                cnt = kh * kw
            else:
                vh = min(ho * sh + kh, H + ph_) - max(ho * sh, ph_)
                vw = min(wo * sw + kw, W + pw_) - max(wo * sw, pw_)
                cnt = max(vh, 0) * max(vw, 0)
            out[:, :, ho, wo] = win.sum((2, 3)) / cnt
    mult = 1.0 if normalize_count else float(np.prod(np.asarray(kernel_size)))
    return (mult * out).astype(np.float32)


if __name__ == "__main__":
    key = jax.random.PRNGKey(0)
    kx, kb, kw = jax.random.split(key, 3)

    # HistModule(in_channels=4, kernel_size=2, num_bins=2, stride=2, padding=0)
    N, C, H, W = 2, 4, 16, 16
    num_bins, kernel_size, stride, padding = 2, 2, 2, 0

    x = jax.random.normal(kx, (N, C, H, W), dtype=jnp.float32)
    # deterministic "parameters": bin_centers_conv.bias and bin_widths_conv.weight
    bin_centers_bias = 0.5 * jax.random.normal(kb, (C,), dtype=jnp.float32)
    bin_widths_weight = 0.5 * jax.random.normal(kw, (C,), dtype=jnp.float32)

    out = hist_module_forward(
        x, bin_centers_bias, bin_widths_weight,
        num_bins=num_bins, kernel_size=kernel_size, stride=stride, padding=padding,
        normalize_count=False, normalize_bins=True,
        count_include_pad=False, ceil_mode=False)
    out = jax.block_until_ready(out)

    ref = _reference_numpy(
        x, bin_centers_bias, bin_widths_weight,
        num_bins=num_bins, kernel_size=kernel_size, stride=stride, padding=padding,
        normalize_count=False, normalize_bins=True,
        count_include_pad=False, ceil_mode=False)

    assert out.shape == ref.shape, (out.shape, ref.shape)
    np.testing.assert_allclose(np.asarray(out), ref, rtol=1e-5, atol=1e-5)
    print("KERNEL_OK")
</pallas_src>

<mosaic_0001>
module attributes {stable_mosaic.version = 11 : i64} {
  func.func @kernel(%arg0: i32, %arg1: memref<8x2xf32, #tpu.memory_space<vmem>>, %arg2: memref<8x256xf32, #tpu.memory_space<vmem>>, %arg3: memref<256x128xf32, #tpu.memory_space<vmem>>, %arg4: memref<8x128xf32, #tpu.memory_space<vmem>>) attributes {dimension_semantics = [#tpu.dimension_semantics<parallel>], iteration_bounds = array<i64: 1>, scalar_prefetch = 0 : i64, scratch_operands = 0 : i64, tpu.core_type = #tpu.core_type<tc>, window_params = [{transform_indices = @transform_0, window_bounds = array<i64: 8, 2>}, {transform_indices = @transform_1, window_bounds = array<i64: 8, 256>}, {pipeline_mode = #tpu.pipeline_mode<synchronous>, transform_indices = @transform_2, window_bounds = array<i64: 256, 128>}, {transform_indices = @transform_3, window_bounds = array<i64: 8, 128>}]} {
    %c0 = arith.constant 0 : index
    %c0_0 = arith.constant 0 : index
    %0 = vector.load %arg2[%c0, %c0_0] : memref<8x256xf32, #tpu.memory_space<vmem>>, vector<8x256xf32>
    %c0_1 = arith.constant 0 : index
    %c0_2 = arith.constant 0 : index
    %1 = vector.load %arg1[%c0_1, %c0_2] : memref<8x2xf32, #tpu.memory_space<vmem>>, vector<8x2xf32>
    %2 = vector.extract_strided_slice %1 {offsets = [0, 0], sizes = [8, 1], strides = [1, 1]} : vector<8x2xf32> to vector<8x1xf32>
    %3 = vector.extract_strided_slice %1 {offsets = [0, 1], sizes = [8, 1], strides = [1, 1]} : vector<8x2xf32> to vector<8x1xf32>
    %4 = vector.broadcast %2 : vector<8x1xf32> to vector<8x256xf32>
    %5 = arith.addf %0, %4 : vector<8x256xf32>
    %6 = math.absf %5 : vector<8x256xf32>
    %7 = vector.broadcast %3 : vector<8x1xf32> to vector<8x256xf32>
    %8 = arith.mulf %7, %6 : vector<8x256xf32>
    %cst = arith.constant 1.000000e+00 : f32
    %9 = vector.broadcast %cst : f32 to vector<8x256xf32>
    %10 = arith.addf %8, %9 : vector<8x256xf32>
    %cst_3 = arith.constant 0.000000e+00 : f32
    %11 = vector.broadcast %cst_3 : f32 to vector<8x256xf32>
    %12 = arith.maximumf %10, %11 : vector<8x256xf32>
    %13 = vector.shape_cast %12 : vector<8x256xf32> to vector<4x2x256xf32>
    %14 = vector.extract_strided_slice %13 {offsets = [0, 0, 0], sizes = [4, 1, 256], strides = [1, 1, 1]} : vector<4x2x256xf32> to vector<4x1x256xf32>
    %15 = vector.shape_cast %14 : vector<4x1x256xf32> to vector<4x256xf32>
    %16 = vector.extract_strided_slice %13 {offsets = [0, 1, 0], sizes = [4, 1, 256], strides = [1, 1, 1]} : vector<4x2x256xf32> to vector<4x1x256xf32>
    %17 = vector.shape_cast %16 : vector<4x1x256xf32> to vector<4x256xf32>
    %18 = arith.addf %15, %17 : vector<4x256xf32>
    %cst_4 = arith.constant 9.99999974E-6 : f32
    %19 = vector.broadcast %cst_4 : f32 to vector<4x256xf32>
    %20 = arith.addf %18, %19 : vector<4x256xf32>
    %21 = tpu.reciprocal %20 : vector<4x256xf32> -> vector<4x256xf32>
    %22 = vector.shape_cast %21 : vector<4x256xf32> to vector<4x1x256xf32>
    %23 = vector.broadcast %22 : vector<4x1x256xf32> to vector<4x2x256xf32>
    %24 = arith.mulf %13, %23 : vector<4x2x256xf32>
    %25 = vector.shape_cast %24 : vector<4x2x256xf32> to vector<8x256xf32>
    %c0_5 = arith.constant 0 : index
    %c0_6 = arith.constant 0 : index
    %26 = vector.load %arg3[%c0_5, %c0_6] : memref<256x128xf32, #tpu.memory_space<vmem>>, vector<256x128xf32>
    %cst_7 = arith.constant dense<0.000000e+00> : vector<8x128xf32>
    %27 = tpu.matmul %25, %26, %cst_7 {dimension_numbers = #tpu.dot_dimension_numbers<[1], [0], [0], [1], [0, 0, 1, 1], [], []>} : vector<8x256xf32>, vector<256x128xf32>, vector<8x128xf32> -> vector<8x128xf32>
    %c0_8 = arith.constant 0 : index
    %c0_9 = arith.constant 0 : index
    %28 = vector.load %arg4[%c0_8, %c0_9] : memref<8x128xf32, #tpu.memory_space<vmem>>, vector<8x128xf32>
    tpu.vector_store %arg4[%c0_8, %c0_9], %27 {strides = array<i32>} : memref<8x128xf32, #tpu.memory_space<vmem>>, vector<8x128xf32>,
    return
  }
  func.func @transform_0(%arg0: i32) -> (i32, i32) {
    %c0_i32 = arith.constant 0 : i32
    %c0_i32_0 = arith.constant 0 : i32
    return %arg0, %c0_i32 : i32, i32
  }
  func.func @transform_1(%arg0: i32) -> (i32, i32) {
    %c0_i32 = arith.constant 0 : i32
    %c0_i32_0 = arith.constant 0 : i32
    return %arg0, %c0_i32 : i32, i32
  }
  func.func @transform_2(%arg0: i32) -> (i32, i32) {
    %c0_i32 = arith.constant 0 : i32
    %c0_i32_0 = arith.constant 0 : i32
    %c0_i32_1 = arith.constant 0 : i32
    return %c0_i32, %c0_i32_0 : i32, i32
  }
  func.func @transform_3(%arg0: i32) -> (i32, i32) {
    %c0_i32 = arith.constant 0 : i32
    %c0_i32_0 = arith.constant 0 : i32
    return %arg0, %c0_i32 : i32, i32
  }
}

</mosaic_0001>

<llo_original>
// kernel: tpu_custom_call.1
$region0: #{tpu_custom_call.1}
  #allocation0 [shape = 'u32[]', space=smem, size = 0x4, offset = 0x4, fixed_abs, tag = 'smem constant byte address 0x4 - core index']
  #allocation1 [shape = 'u32[144,128]{1,0:T(1,128)}', space=vmem, size = 0x12000, scoped, tag = 'internal scratch']
  %s0 = inlined_call_operand.vmem [shape: f32[8,2], index: 0, kind: input, shape index: {}]
  %s1 = inlined_call_operand.hbm [shape: f32[8,256], index: 1, kind: input, shape index: {}]
  %s2 = inlined_call_operand.hbm [shape: f32[256,128], index: 2, kind: input, shape index: {}]
  %s3 = inlined_call_operand.hbm [shape: f32[8,128], index: 3, kind: output, shape index: {}]
  %s4 = sld [smem:[#allocation0]]
  $region30: #{tpu_custom_call.1} parent=0
    _
  %s6 = ssub.s32 1, %s4
  %s7 = scalar_select 0, %s6, %s4
  $region1: #{tpu_custom_call.1} parent=0
    #allocation2 [shape = 'u8[8192]{0}', space=vmem, size = 0x2000, scoped, tag = 'input window, operand 1, single buffered']
    #allocation3 [shape = 's32[1]{0}', space=sflag, size = 0x4, scoped, tag = 'scoped memory for tpu_custom_call.1']
    #allocation4 [shape = 's32[1]{0}', space=sflag, size = 0x4, scoped, tag = 'scoped memory for tpu_custom_call.1']
    #allocation5 [shape = 'u8[131072]{0}', space=vmem, size = 0x20000, scoped, tag = 'input window, operand 2, single buffered']
    #allocation6 [shape = 's32[1]{0}', space=sflag, size = 0x4, scoped, tag = 'scoped memory for tpu_custom_call.1']
    #allocation7 [shape = 'u8[4096]{0}', space=vmem, size = 0x1000, scoped, tag = 'output window, operand 0, single buffered']
    %8 = vsyncpa [#allocation3], 0
    %9 = vsyncpa [#allocation6], 0
    %10 = vsyncpa [#allocation4], 0
    // Predicated region
    $region2: #{tpu_custom_call.1} parent=1 // pred_check
      _
    $region3: #{tpu_custom_call.1} parent=1 // pred_check_branch
      %12 = sbr.rel (0) target = $region5
    $region4: #{tpu_custom_call.1} parent=1 // pred_region
      _
    $region5: #{tpu_custom_call.1} parent=1 // pred_fallthru
      _
    // Predicated region
    $region6: #{tpu_custom_call.1} parent=1 // pred_check
      _
    $region7: #{tpu_custom_call.1} parent=1 // pred_check_branch
      %14 = sbr.rel (0) target = $region9
    $region8: #{tpu_custom_call.1} parent=1 // pred_region
      %s16 = ssub.s32 256, 256
      %17 = vsyncadd [#allocation3], %s16
      %s19 = sshll.u32 [#allocation2], 4
      %s20 = int_to_ptr.vmem [resolvable:$true] %s19
      %22 = dma.hbm_to_vmem [thread:$0]  %s1, 256, %s20, [#allocation3]
    $region9: #{tpu_custom_call.1} parent=1 // pred_fallthru
      _
    // Predicated region
    $region10: #{tpu_custom_call.1} parent=1 // pred_check
      _
    $region11: #{tpu_custom_call.1} parent=1 // pred_check_branch
      %24 = sbr.rel (0) target = $region13
    $region12: #{tpu_custom_call.1} parent=1 // pred_region
      %s26 = ssub.s32 4096, 4096
      %27 = vsyncadd [#allocation6], %s26
      %s28 = sshll.u32 [#allocation5], 4
      %s29 = int_to_ptr.vmem [resolvable:$true] %s28
      %34 = dma.hbm_to_vmem [thread:$0]  %s2, 4096, %s29, [#allocation6], 128, 128, 8
    $region13: #{tpu_custom_call.1} parent=1 // pred_fallthru
      _
    // Predicated region
    $region14: #{tpu_custom_call.1} parent=1 // pred_check
      _
    $region15: #{tpu_custom_call.1} parent=1 // pred_check_branch
      %36 = sbr.rel (0) target = $region17
    $region16: #{tpu_custom_call.1} parent=1 // pred_region
      %37 = dma.done [#allocation3], 256
    $region17: #{tpu_custom_call.1} parent=1 // pred_fallthru
      _
    // Predicated region
    $region18: #{tpu_custom_call.1} parent=1 // pred_check
      _
    $region19: #{tpu_custom_call.1} parent=1 // pred_check_branch
      %39 = sbr.rel (0) target = $region21
    $region20: #{tpu_custom_call.1} parent=1 // pred_region
      %40 = dma.done [#allocation6], 4096
    $region21: #{tpu_custom_call.1} parent=1 // pred_fallthru
      _
    %v41 = vld [vmem:[#allocation2] sm:$0xff]
    %v42 = vld [vmem:[#allocation2 + $0x8] sm:$0xff]
    %v43 = vld [vmem:[%s0] sm:$0xff]
    %45 = vset.pattern.permute.xlu0 0
    %46 = vperm.xlu0 %45, %v43
    %v47 = vpop.permute.xlu0 %46
    %v49 = vadd.f32 %v41, %v47
    %v50 = vadd.f32 %v42, %v47
    %v51 = vand.u32 2147483647, %v49
    %v52 = vand.u32 2147483647, %v50
    %53 = vset.pattern.permute.xlu0 1
    %54 = vperm.xlu0 %53, %v43
    %v55 = vpop.permute.xlu0 %54
    %v57 = vmul.f32 %v55, %v51
    %v58 = vmul.f32 %v55, %v52
    %v59 = vadd.f32 %v57, 1.0
    %v60 = vadd.f32 %v58, 1.0
    %v61 = vmax.f32 %v59, 0.0
    %v62 = vmax.f32 %v60, 0.0
    %v65 = vcombine.low %v61, %v62
    %v66 = vcombine.high %v61, %v62
    %v68 = vunpack.c.l.s4 1983009808
    %v69 = vunpack.c.0.s8 %v68
    %v70 = vlaneseq
    %v71 = vshrl.u32 %v70, 7
    %v72 = vsub.s32 %v69, %v71
    %v73 = vrot.slane %v65, %v72
    %v75 = vunpack.c.l.s4 1983009808
    %v76 = vunpack.c.0.s8 %v75
    %v77 = vlaneseq
    %v78 = vshrl.u32 %v77, 7
    %v79 = vsub.s32 %v76, %v78
    %v80 = vrot.slane %v66, %v79
    %v81 = vcombine.high %v73, %v73
    %v82 = vcombine.high %v80, %v80
    %v87 = vrot.slane %v73, 7
    %v88 = vrot.slane %v87, 2
    %v89 = vrot.slane %v81, 7
    %v90 = vrot.slane %v89, 2
    %v91 = vrot.slane %v80, 7
    %v92 = vrot.slane %v91, 2
    %v93 = vrot.slane %v82, 7
    %v94 = vrot.slane %v93, 2
    %v99 = vadd.f32 %v73, %v88
    %v100 = vadd.f32 %v81, %v90
    %v101 = vadd.f32 %v80, %v92
    %v102 = vadd.f32 %v82, %v94
    %v103 = vadd.f32 %v99, 1e-05
    %v104 = vadd.f32 %v100, 1e-05
    %v105 = vadd.f32 %v101, 1e-05
    %v106 = vadd.f32 %v102, 1e-05
    %v107 = vrcp.pop %v103
    %v108 = vrcp.pop %v104
    %v109 = vrcp.pop %v105
    %v110 = vrcp.pop %v106
    %v115 = vlaneseq
    %v116 = vshrl.u32 %v115, 7
    %v117 = vsub.s32 0, %v116
    %v118 = vrot.slane %v107, %v117
    %v119 = vlaneseq
    %v120 = vshrl.u32 %v119, 7
    %v121 = vsub.s32 2, %v120
    %v122 = vrot.slane %v107, %v121
    %v123 = vlaneseq
    %v124 = vshrl.u32 %v123, 7
    %v125 = vsub.s32 0, %v124
    %v126 = vrot.slane %v108, %v125
    %v127 = vlaneseq
    %v128 = vshrl.u32 %v127, 7
    %v129 = vsub.s32 2, %v128
    %v130 = vrot.slane %v108, %v129
    %v131 = vlaneseq
    %v132 = vshrl.u32 %v131, 7
    %v133 = vsub.s32 0, %v132
    %v134 = vrot.slane %v109, %v133
    %v135 = vlaneseq
    %v136 = vshrl.u32 %v135, 7
    %v137 = vsub.s32 2, %v136
    %v138 = vrot.slane %v109, %v137
    %v139 = vlaneseq
    %v140 = vshrl.u32 %v139, 7
    %v141 = vsub.s32 0, %v140
    %v142 = vrot.slane %v110, %v141
    %v143 = vlaneseq
    %v144 = vshrl.u32 %v143, 7
    %v145 = vsub.s32 2, %v144
    %v146 = vrot.slane %v110, %v145
    %v155 = vlaneseq
    %v156 = vshrl.u32 %v155, 7
    %v157 = vsub.s32 0, %v156
    %v158 = vrot.slane %v118, %v157
    %v159 = vlaneseq
    %v160 = vshrl.u32 %v159, 7
    %v161 = vsub.s32 0, %v160
    %v162 = vrot.slane %v122, %v161
    %v163 = vlaneseq
    %v164 = vshrl.u32 %v163, 7
    %v165 = vsub.s32 0, %v164
    %v166 = vrot.slane %v126, %v165
    %v167 = vlaneseq
    %v168 = vshrl.u32 %v167, 7
    %v169 = vsub.s32 0, %v168
    %v170 = vrot.slane %v130, %v169
    %v171 = vlaneseq
    %v172 = vshrl.u32 %v171, 7
    %v173 = vsub.s32 0, %v172
    %v174 = vrot.slane %v134, %v173
    %v175 = vlaneseq
    %v176 = vshrl.u32 %v175, 7
    %v177 = vsub.s32 0, %v176
    %v178 = vrot.slane %v138, %v177
    %v179 = vlaneseq
    %v180 = vshrl.u32 %v179, 7
    %v181 = vsub.s32 0, %v180
    %v182 = vrot.slane %v142, %v181
    %v183 = vlaneseq
    %v184 = vshrl.u32 %v183, 7
    %v185 = vsub.s32 0, %v184
    %v186 = vrot.slane %v146, %v185
    %v195 = vcombine.low %v158, %v162
    %v197 = vunpack.c.l.s4 1983009808
    %v198 = vunpack.c.0.s8 %v197
    %v199 = vlaneseq
    %v200 = vshrl.u32 %v199, 7
    %v201 = vsub.s32 %v198, %v200
    %v202 = vrot.slane %v195, %v201
    %v203 = vcombine.low %v166, %v170
    %v205 = vunpack.c.l.s4 1983009808
    %v206 = vunpack.c.0.s8 %v205
    %v207 = vlaneseq
    %v208 = vshrl.u32 %v207, 7
    %v209 = vsub.s32 %v206, %v208
    %v210 = vrot.slane %v203, %v209
    %v211 = vcombine.low %v174, %v178
    %v213 = vunpack.c.l.s4 1983009808
    %v214 = vunpack.c.0.s8 %v213
    %v215 = vlaneseq
    %v216 = vshrl.u32 %v215, 7
    %v217 = vsub.s32 %v214, %v216
    %v218 = vrot.slane %v211, %v217
    %v219 = vcombine.low %v182, %v186
    %v221 = vunpack.c.l.s4 1983009808
    %v222 = vunpack.c.0.s8 %v221
    %v223 = vlaneseq
    %v224 = vshrl.u32 %v223, 7
    %v225 = vsub.s32 %v222, %v224
    %v226 = vrot.slane %v219, %v225
    %v231 = vmul.f32 %v73, %v202
    %v232 = vmul.f32 %v81, %v210
    %v233 = vmul.f32 %v80, %v218
    %v234 = vmul.f32 %v82, %v226
    %v235 = vld [vmem:[#allocation5] sm:$0xff]
    %v236 = vld [vmem:[#allocation5 + $0x8] sm:$0xff]
    %v237 = vld [vmem:[#allocation5 + $0x10] sm:$0xff]
    %v238 = vld [vmem:[#allocation5 + $0x18] sm:$0xff]
    %v239 = vld [vmem:[#allocation5 + $0x20] sm:$0xff]
    %v240 = vld [vmem:[#allocation5 + $0x28] sm:$0xff]
    %v241 = vld [vmem:[#allocation5 + $0x30] sm:$0xff]
    %v242 = vld [vmem:[#allocation5 + $0x38] sm:$0xff]
    %v243 = vld [vmem:[#allocation5 + $0x40] sm:$0xff]
    %v244 = vld [vmem:[#allocation5 + $0x48] sm:$0xff]
    %v245 = vld [vmem:[#allocation5 + $0x50] sm:$0xff]
    %v246 = vld [vmem:[#allocation5 + $0x58] sm:$0xff]
    %v247 = vld [vmem:[#allocation5 + $0x60] sm:$0xff]
    %v248 = vld [vmem:[#allocation5 + $0x68] sm:$0xff]
    %v249 = vld [vmem:[#allocation5 + $0x70] sm:$0xff]
    %v250 = vld [vmem:[#allocation5 + $0x78] sm:$0xff]
    %v251 = vld [vmem:[#allocation5 + $0x80] sm:$0xff]
    %v252 = vld [vmem:[#allocation5 + $0x88] sm:$0xff]
    %v253 = vld [vmem:[#allocation5 + $0x90] sm:$0xff]
    %v254 = vld [vmem:[#allocation5 + $0x98] sm:$0xff]
    %v255 = vld [vmem:[#allocation5 + $0xa0] sm:$0xff]
    %v256 = vld [vmem:[#allocation5 + $0xa8] sm:$0xff]
    %v257 = vld [vmem:[#allocation5 + $0xb0] sm:$0xff]
    %v258 = vld [vmem:[#allocation5 + $0xb8] sm:$0xff]
    %v259 = vld [vmem:[#allocation5 + $0xc0] sm:$0xff]
    %v260 = vld [vmem:[#allocation5 + $0xc8] sm:$0xff]
    %v261 = vld [vmem:[#allocation5 + $0xd0] sm:$0xff]
    %v262 = vld [vmem:[#allocation5 + $0xd8] sm:$0xff]
    %v263 = vld [vmem:[#allocation5 + $0xe0] sm:$0xff]
    %v264 = vld [vmem:[#allocation5 + $0xe8] sm:$0xff]
    %v265 = vld [vmem:[#allocation5 + $0xf0] sm:$0xff]
    %v266 = vld [vmem:[#allocation5 + $0xf8] sm:$0xff]
    %v271 = vcombine.low %v231, %v232
    %v272 = vcombine.low %v233, %v234
    %v274 = vunpack.c.l.s4 1983009808
    %v275 = vunpack.c.0.s8 %v274
    %v276 = vlaneseq
    %v277 = vshrl.u32 %v276, 7
    %v278 = vsub.s32 %v275, %v277
    %v279 = vrot.slane %v271, %v278
    %v281 = vunpack.c.l.s4 1983009808
    %v282 = vunpack.c.0.s8 %v281
    %v283 = vlaneseq
    %v284 = vshrl.u32 %v283, 7
    %v285 = vsub.s32 %v282, %v284
    %v286 = vrot.slane %v272, %v285
    %v287 = vcombine.low %v279, %v286
    %v288 = vcombine.high %v279, %v286
    %291 = vmatprep.subr.mxu0 0.0
    %292 = vmatpush1.msra.mxu0 %v250
    %293 = vmatprep.subr.mxu0 0.0
    %294 = vmatpush1.msra.mxu0 %v249
    %295 = vmatprep.subr.mxu0 0.0
    %296 = vmatpush1.msra.mxu0 %v248
    %297 = vmatprep.subr.mxu0 0.0
    %298 = vmatpush1.msra.mxu0 %v247
    %299 = vmatprep.subr.mxu0 0.0
    %300 = vmatpush1.msra.mxu0 %v246
    %301 = vmatprep.subr.mxu0 0.0
    %302 = vmatpush1.msra.mxu0 %v245
    %303 = vmatprep.subr.mxu0 0.0
    %304 = vmatpush1.msra.mxu0 %v244
    %305 = vmatprep.subr.mxu0 0.0
    %306 = vmatpush1.msra.mxu0 %v243
    %307 = vmatprep.subr.mxu0 0.0
    %308 = vmatpush1.msra.mxu0 %v242
    %309 = vmatprep.subr.mxu0 0.0
    %310 = vmatpush1.msra.mxu0 %v241
    %311 = vmatprep.subr.mxu0 0.0
    %312 = vmatpush1.msra.mxu0 %v240
    %313 = vmatprep.subr.mxu0 0.0
    %314 = vmatpush1.msra.mxu0 %v239
    %315 = vmatprep.subr.mxu0 0.0
    %316 = vmatpush1.msra.mxu0 %v238
    %317 = vmatprep.subr.mxu0 0.0
    %318 = vmatpush1.msra.mxu0 %v237
    %319 = vmatprep.subr.mxu0 0.0
    %320 = vmatpush1.msra.mxu0 %v236
    %321 = vmatprep.subr.mxu0 0.0
    %322 = vmatpush1.msra.mxu0 %v235
    %323 = vmatprep.subr.mxu0 0.0
    %324 = vmatpush2.msra.mxu0 %v266
    %325 = vmatprep.subr.mxu0 0.0
    %326 = vmatpush2.msra.mxu0 %v265
    %327 = vmatprep.subr.mxu0 0.0
    %328 = vmatpush2.msra.mxu0 %v264
    %329 = vmatprep.subr.mxu0 0.0
    %330 = vmatpush2.msra.mxu0 %v263
    %331 = vmatprep.subr.mxu0 0.0
    %332 = vmatpush2.msra.mxu0 %v262
    %333 = vmatprep.subr.mxu0 0.0
    %334 = vmatpush2.msra.mxu0 %v261
    %335 = vmatprep.subr.mxu0 0.0
    %336 = vmatpush2.msra.mxu0 %v260
    %337 = vmatprep.subr.mxu0 0.0
    %338 = vmatpush2.msra.mxu0 %v259
    %339 = vmatprep.subr.mxu0 0.0
    %340 = vmatpush2.msra.mxu0 %v258
    %341 = vmatprep.subr.mxu0 0.0
    %342 = vmatpush2.msra.mxu0 %v257
    %343 = vmatprep.subr.mxu0 0.0
    %344 = vmatpush2.msra.mxu0 %v256
    %345 = vmatprep.subr.mxu0 0.0
    %346 = vmatpush2.msra.mxu0 %v255
    %347 = vmatprep.subr.mxu0 0.0
    %348 = vmatpush2.msra.mxu0 %v254
    %349 = vmatprep.subr.mxu0 0.0
    %350 = vmatpush2.msra.mxu0 %v253
    %351 = vmatprep.subr.mxu0 0.0
    %352 = vmatpush2.msra.mxu0 %v252
    %353 = vmatprep.subr.mxu0 0.0
    %354 = vmatpush2.msra.mxu0 %v251
    %355 = vmatprep.mubr.f32.mxu0 %v288
    %356 = vmatmul.mubr.f32.gmra.mxu0 %v287
    %v357 = vpop.f32.mrf.mxu0
    %v358 = vadd.f32 0.0, %v357
    %v359 = vpop.f32.mrf.mxu0
    %360 = vdwg.mxu0
    %361 = vst [vmem:[#allocation7] sm:$0xff] %v358
    // Predicated region
    $region22: #{tpu_custom_call.1} parent=1 // pred_check
      _
    $region23: #{tpu_custom_call.1} parent=1 // pred_check_branch
      %363 = sbr.rel (0) target = $region25
    $region24: #{tpu_custom_call.1} parent=1 // pred_region
      %s365 = ssub.s32 128, 128
      %366 = vsyncadd [#allocation4], %s365
      %s368 = sshll.u32 [#allocation7], 4
      %s369 = int_to_ptr.vmem [resolvable:$true] %s368
      %371 = dma.vmem_to_hbm [thread:$0]  %s369, 128, %s3, [#allocation4]
    $region25: #{tpu_custom_call.1} parent=1 // pred_fallthru
      _
    // Predicated region
    $region26: #{tpu_custom_call.1} parent=1 // pred_check
      _
    $region27: #{tpu_custom_call.1} parent=1 // pred_check_branch
      %373 = sbr.rel (0) target = $region29
    $region28: #{tpu_custom_call.1} parent=1 // pred_region
      %374 = dma.done [#allocation4], 128
    $region29: #{tpu_custom_call.1} parent=1 // pred_fallthru
      _
    %375 = vsyncpa [#allocation3], 1
    %376 = vsyncpa [#allocation6], 1
    %377 = vsyncpa [#allocation4], 1

</llo_original>
